<compile_context>
chip_gen: v7x
topology: tpu7x:2x2x1
jax: 0.10.0
libtpu: 0.0.40
codegen_flags: <defaults>
</compile_context>

<pallas_src>
import functools

import jax
import jax.numpy as jnp
from jax import lax
from jax.experimental import pallas as pl
from jax.experimental.pallas import tpu as pltpu


_NUM_CLASSES = 9
_LANES = 128


def _round_up(x: int, m: int) -> int:
    return ((x + m - 1) // m) * m


def _tensorcores_per_device() -> int:
    """1 for single-TensorCore chips (v2/v3/v5e/v6e), 2 for megacore chips."""
    try:
        kind = jax.devices()[0].device_kind.lower()
    except Exception:
        return 1
    if any(t in kind for t in ("v2", "v3", "v5e", "v6e", "lite")):
        return 1
    # v4 / v5p / v7x expose two TensorCores to one Pallas program.
    return 2


def _f1_partial_kernel(y_pred_ref, y_true_ref, part_ref, *,
                       n_valid: int, bn: int, blocks_per_core: int):
    """Accumulate per-class, per-lane partial sums of
       [one_hot * softmax, softmax, one_hot] over this core's batch blocks."""
    c = y_pred_ref.shape[0]                      # 9 classes (sublane axis)
    k = bn // _LANES                             # 128-lane chunks per block

    p = pl.program_id(0)                         # TensorCore split of the batch
    i = pl.program_id(1)                         # reduction over batch blocks
    b = p * blocks_per_core + i                  # linear block index
    start = b * bn                               # first sample of this block

    @pl.when(i == 0)
    def _init():
        part_ref[...] = jnp.zeros_like(part_ref)

    # Hoisted constants (JAX does not CSE broadcasts).
    class_ids = lax.broadcasted_iota(jnp.int32, (c, _LANES), 0)
    lane_ids = lax.broadcasted_iota(jnp.int32, (1, _LANES), 1)

    def block_accumulate(masked: bool):
        def chunk(j, carry):
            acc_tp, acc_sp, acc_oh = carry
            off = pl.multiple_of(j * _LANES, _LANES)
            logits = y_pred_ref[:, pl.ds(off, _LANES)].astype(jnp.float32)
            labels = y_true_ref[:, pl.ds(off, _LANES)]

            # Numerically stable softmax over the class (sublane) axis.
            m = jnp.max(logits, axis=0, keepdims=True)
            e = jnp.exp(logits - m)
            d = jnp.sum(e, axis=0, keepdims=True)
            r = pl.reciprocal(d, approx=True)     # EUP slot
            r = r * (2.0 - d * r)                 # one Newton step -> f32 exact
            prob = e * r

            one_hot = (class_ids == labels).astype(jnp.float32)

            if masked:
                # Edge block only.  Keep this a select (not an arithmetic
                # mask) so NaN/Inf in out-of-bounds garbage columns cannot
                # leak into the sums.
                valid = (lane_ids + (start + off)) < n_valid
                prob = jnp.where(valid, prob, 0.0)
                one_hot = jnp.where(valid, one_hot, 0.0)

            return (acc_tp + one_hot * prob, acc_sp + prob, acc_oh + one_hot)

        zero = jnp.zeros((c, _LANES), jnp.float32)
        acc_tp, acc_sp, acc_oh = lax.fori_loop(
            0, k, chunk, (zero, zero, zero), unroll=min(8, k))

        # One read-modify-write of the VMEM-resident output block per block.
        part_ref[0] += acc_tp      # sum(one_hot * p)   -> tp
        part_ref[1] += acc_sp      # sum(p)             -> tp + fp
        part_ref[2] += acc_oh      # sum(one_hot)       -> tp + fn

    # Interior blocks: zero masking work.
    @pl.when(start + bn <= n_valid)
    def _interior():
        block_accumulate(masked=False)

    # Partially valid edge block (blocks entirely past N contribute nothing).
    @pl.when(jnp.logical_and(start < n_valid, start + bn > n_valid))
    def _edge():
        block_accumulate(masked=True)


def f1_loss(y_pred, y_true, epsilon: float = 1e-7, *, block_n: int = 16384,
            num_parallel=None, class_major: bool = False):
    """Soft-F1 loss matching the reference PyTorch F1_Loss.forward.

    y_pred: (N, 9) logits (or (9, N) if class_major=True; bf16 accepted).
    y_true: (N,) integer class labels in [0, 9).
    """
    assert y_pred.ndim == 2
    assert y_true.ndim == 1
    if class_major:
        c, n = y_pred.shape
        y_pred_t = y_pred                        # already (9, N): no relayout
    else:
        n, c = y_pred.shape
        # One class-major relayout pass (classes -> sublanes, batch -> lanes)
        # so the kernel math runs lane-dense.  Pass class_major=True to skip.
        y_pred_t = jnp.transpose(y_pred)
    assert c == _NUM_CLASSES, "reference module one-hots to 9 classes"
    assert y_true.shape[0] == n

    labels = y_true.astype(jnp.int32).reshape(1, n)   # lane-dense, no copy

    if num_parallel is None:
        num_parallel = _tensorcores_per_device()
    # Tiny batches: never split across cores / never create all-pad blocks.
    num_parallel = max(1, min(int(num_parallel), max(1, n // _LANES)))

    bn = max(_LANES, min(block_n, _round_up(pl.cdiv(n, num_parallel), _LANES)))
    bn = _round_up(bn, _LANES)
    nblocks = pl.cdiv(n, bn)                     # blocks touching real data
    blocks_per_core = pl.cdiv(nblocks, num_parallel)
    last_block = nblocks - 1

    def in_map(p, i):
        # Clamp so the (at most one) overhang grid step never DMAs out of
        # bounds; its contribution is suppressed inside the kernel.
        return (0, jnp.minimum(p * blocks_per_core + i, last_block))

    parts = pl.pallas_call(
        functools.partial(_f1_partial_kernel, n_valid=n, bn=bn,
                          blocks_per_core=blocks_per_core),
        out_shape=jax.ShapeDtypeStruct(
            (num_parallel, 3, _NUM_CLASSES, _LANES), jnp.float32),
        grid=(num_parallel, blocks_per_core),
        in_specs=[
            pl.BlockSpec((_NUM_CLASSES, bn), in_map),
            pl.BlockSpec((1, bn), in_map),
        ],
        out_specs=pl.BlockSpec((None, 3, _NUM_CLASSES, _LANES),
                               lambda p, i: (p, 0, 0, 0)),
        compiler_params=pltpu.CompilerParams(
            dimension_semantics=("parallel", "arbitrary")),
    )(y_pred_t, labels)

    # Tiny finalize (num_parallel * 3 * 9 * 128 values) in plain JAX: lane sum
    # of the per-lane partials plus precision/recall/F1/clamp/mean.
    sums = jnp.sum(parts, axis=(0, 3))           # (3, 9)
    tp, sum_p, cnt = sums[0], sums[1], sums[2]
    fp = sum_p - tp
    fn = cnt - tp
    precision = tp / (tp + fp + epsilon)
    recall = tp / (tp + fn + epsilon)
    f1 = 2.0 * precision * recall / (precision + recall + epsilon)
    f1 = jnp.clip(f1, epsilon, 1.0 - epsilon)
    return 1.0 - jnp.mean(f1)


def _f1_loss_ref(y_pred, y_true, epsilon: float = 1e-7):
    """Pure-JAX reference mirroring the PyTorch module."""
    y_true_oh = jax.nn.one_hot(y_true, _NUM_CLASSES, dtype=jnp.float32)
    p = jax.nn.softmax(y_pred.astype(jnp.float32), axis=1)
    tp = jnp.sum(y_true_oh * p, axis=0)
    fp = jnp.sum((1.0 - y_true_oh) * p, axis=0)
    fn = jnp.sum(y_true_oh * (1.0 - p), axis=0)
    precision = tp / (tp + fp + epsilon)
    recall = tp / (tp + fn + epsilon)
    f1 = 2.0 * precision * recall / (precision + recall + epsilon)
    f1 = jnp.clip(f1, epsilon, 1.0 - epsilon)
    return 1.0 - jnp.mean(f1)


if __name__ == "__main__":
    key = jax.random.PRNGKey(0)
    k1, k2, k3, k4 = jax.random.split(key, 4)

    # Small smoke test at shapes implied by the module: (N, 9) logits, (N,) labels.
    N, C = 64, 9
    y_pred = jax.random.normal(k1, (N, C), dtype=jnp.float32)
    y_true = jax.random.randint(k2, (N,), 0, C, dtype=jnp.int32)

    loss = jax.block_until_ready(jax.jit(f1_loss)(y_pred, y_true))
    ref = jax.block_until_ready(_f1_loss_ref(y_pred, y_true))
    assert jnp.allclose(loss, ref, atol=2e-5, rtol=2e-5), (loss, ref)

    # Exercise the multi-block pipeline + masked edge-block path
    # (deliberately small block size).
    N2 = 1000
    y_pred2 = jax.random.normal(k3, (N2, C), dtype=jnp.float32)
    y_true2 = jax.random.randint(k4, (N2,), 0, C, dtype=jnp.int32)
    f_small_blocks = jax.jit(functools.partial(f1_loss, block_n=256))
    loss2 = jax.block_until_ready(f_small_blocks(y_pred2, y_true2))
    ref2 = jax.block_until_ready(_f1_loss_ref(y_pred2, y_true2))
    assert jnp.allclose(loss2, ref2, atol=2e-5, rtol=2e-5), (loss2, ref2)

    print("KERNEL_OK")
</pallas_src>

<mosaic_0001>
module attributes {stable_mosaic.version = 11 : i64} {
  func.func @_f1_partial_kernel(%arg0: i32, %arg1: i32, %arg2: memref<9x128xf32, #tpu.memory_space<vmem>>, %arg3: memref<1x128xi32, #tpu.memory_space<vmem>>, %arg4: memref<1x3x9x128xf32, #tpu.memory_space<vmem>>) attributes {dimension_semantics = [#tpu.dimension_semantics<parallel>, #tpu.dimension_semantics<arbitrary>], iteration_bounds = array<i64: 1, 1>, scalar_prefetch = 0 : i64, scratch_operands = 0 : i64, tpu.core_type = #tpu.core_type<tc>, window_params = [{transform_indices = @transform_0, window_bounds = array<i64: 9, 128>}, {transform_indices = @transform_1, window_bounds = array<i64: 1, 128>}, {transform_indices = @transform_2, window_bounds = array<i64: 1, 3, 9, 128>}]} {
    %c1_i32 = arith.constant 1 : i32
    %0 = arith.muli %arg0, %c1_i32 : i32
    %1 = arith.addi %0, %arg1 : i32
    %c128_i32 = arith.constant 128 : i32
    %2 = arith.muli %1, %c128_i32 : i32
    %c0_i32 = arith.constant 0 : i32
    %3 = arith.cmpi eq, %arg1, %c0_i32 : i32
    %4 = arith.extui %3 : i1 to i32
    %c0_i32_0 = arith.constant 0 : i32
    %5 = arith.cmpi ne, %4, %c0_i32_0 : i32
    scf.if %5 {
      %cst = arith.constant 0.000000e+00 : f32
      %18 = vector.broadcast %cst : f32 to vector<3x9x128xf32>
      %c0 = arith.constant 0 : index
      %c0_7 = arith.constant 0 : index
      %c0_8 = arith.constant 0 : index
      %c0_9 = arith.constant 0 : index
      %19 = vector.load %arg4[%c0, %c0_7, %c0_8, %c0_9] : memref<1x3x9x128xf32, #tpu.memory_space<vmem>>, vector<1x3x9x128xf32>
      %20 = vector.shape_cast %19 : vector<1x3x9x128xf32> to vector<3x9x128xf32>
      %21 = vector.shape_cast %18 : vector<3x9x128xf32> to vector<1x3x9x128xf32>
      tpu.vector_store %arg4[%c0, %c0_7, %c0_8, %c0_9], %21 {strides = array<i32>} : memref<1x3x9x128xf32, #tpu.memory_space<vmem>>, vector<1x3x9x128xf32>,
    } else {
    }
    %6 = tpu.iota {dimensions = array<i32: 0>} : vector<9x128xi32>
    %7 = tpu.iota {dimensions = array<i32: 1>} : vector<1x128xi32>
    %c128_i32_1 = arith.constant 128 : i32
    %8 = arith.addi %2, %c128_i32_1 : i32
    %c64_i32 = arith.constant 64 : i32
    %9 = arith.cmpi sle, %8, %c64_i32 : i32
    %10 = arith.extui %9 : i1 to i32
    %c0_i32_2 = arith.constant 0 : i32
    %11 = arith.cmpi ne, %10, %c0_i32_2 : i32
    scf.if %11 {
      %cst = arith.constant 0.000000e+00 : f32
      %18 = vector.broadcast %cst : f32 to vector<9x128xf32>
      %c0_i32_7 = arith.constant 0 : i32
      %c128_i32_8 = arith.constant 128 : i32
      %19 = arith.muli %c0_i32_7, %c128_i32_8 : i32
      %20 = tpu.assume_multiple %19, 128 : i32
      %c0 = arith.constant 0 : index
      %21 = arith.index_cast %20 : i32 to index
      %22 = vector.load %arg2[%c0, %21] : memref<9x128xf32, #tpu.memory_space<vmem>>, vector<9x128xf32>
      %c0_9 = arith.constant 0 : index
      %23 = arith.index_cast %20 : i32 to index
      %24 = vector.load %arg3[%c0_9, %23] : memref<1x128xi32, #tpu.memory_space<vmem>>, vector<1x128xi32>
      %cst_10 = arith.constant dense<0xFF800000> : vector<128xf32>
      %25 = vector.multi_reduction <maximumf>, %22, %cst_10 [0] : vector<9x128xf32> to vector<128xf32>
      %26 = vector.shape_cast %25 : vector<128xf32> to vector<1x128xf32>
      %27 = vector.broadcast %26 : vector<1x128xf32> to vector<9x128xf32>
      %28 = arith.subf %22, %27 : vector<9x128xf32>
      %29 = math.exp %28 : vector<9x128xf32>
      %cst_11 = arith.constant dense<0.000000e+00> : vector<128xf32>
      %30 = vector.multi_reduction <add>, %29, %cst_11 [0] : vector<9x128xf32> to vector<128xf32>
      %31 = vector.shape_cast %30 : vector<128xf32> to vector<1x128xf32>
      %32 = tpu.reciprocal %31 {approx = true} : vector<1x128xf32> -> vector<1x128xf32>
      %33 = arith.mulf %31, %32 : vector<1x128xf32>
      %cst_12 = arith.constant 2.000000e+00 : f32
      %34 = vector.broadcast %cst_12 : f32 to vector<1x128xf32>
      %35 = arith.subf %34, %33 : vector<1x128xf32>
      %36 = arith.mulf %32, %35 : vector<1x128xf32>
      %37 = vector.broadcast %36 : vector<1x128xf32> to vector<9x128xf32>
      %38 = arith.mulf %29, %37 : vector<9x128xf32>
      %39 = vector.broadcast %24 : vector<1x128xi32> to vector<9x128xi32>
      %40 = arith.cmpi eq, %6, %39 : vector<9x128xi32>
      %41 = arith.extui %40 : vector<9x128xi1> to vector<9x128xi32>
      %42 = arith.sitofp %41 : vector<9x128xi32> to vector<9x128xf32>
      %43 = arith.mulf %42, %38 : vector<9x128xf32>
      %44 = arith.addf %18, %43 : vector<9x128xf32>
      %45 = arith.addf %18, %38 : vector<9x128xf32>
      %46 = arith.addf %18, %42 : vector<9x128xf32>
      %c1_i32_13 = arith.constant 1 : i32
      %c0_14 = arith.constant 0 : index
      %c0_15 = arith.constant 0 : index
      %c0_16 = arith.constant 0 : index
      %c0_17 = arith.constant 0 : index
      %47 = vector.load %arg4[%c0_14, %c0_15, %c0_16, %c0_17] : memref<1x3x9x128xf32, #tpu.memory_space<vmem>>, vector<1x1x9x128xf32>
      %48 = vector.shape_cast %47 : vector<1x1x9x128xf32> to vector<9x128xf32>
      %49 = arith.addf %48, %44 : vector<9x128xf32>
      %c0_18 = arith.constant 0 : index
      %c0_19 = arith.constant 0 : index
      %c0_20 = arith.constant 0 : index
      %c0_21 = arith.constant 0 : index
      %50 = vector.load %arg4[%c0_18, %c0_19, %c0_20, %c0_21] : memref<1x3x9x128xf32, #tpu.memory_space<vmem>>, vector<1x1x9x128xf32>
      %51 = vector.shape_cast %50 : vector<1x1x9x128xf32> to vector<9x128xf32>
      %52 = vector.shape_cast %49 : vector<9x128xf32> to vector<1x1x9x128xf32>
      tpu.vector_store %arg4[%c0_18, %c0_19, %c0_20, %c0_21], %52 {strides = array<i32>} : memref<1x3x9x128xf32, #tpu.memory_space<vmem>>, vector<1x1x9x128xf32>,
      %c0_22 = arith.constant 0 : index
      %c1 = arith.constant 1 : index
      %c0_23 = arith.constant 0 : index
      %c0_24 = arith.constant 0 : index
      %53 = vector.load %arg4[%c0_22, %c1, %c0_23, %c0_24] : memref<1x3x9x128xf32, #tpu.memory_space<vmem>>, vector<1x1x9x128xf32>
      %54 = vector.shape_cast %53 : vector<1x1x9x128xf32> to vector<9x128xf32>
      %55 = arith.addf %54, %45 : vector<9x128xf32>
      %c0_25 = arith.constant 0 : index
      %c1_26 = arith.constant 1 : index
      %c0_27 = arith.constant 0 : index
      %c0_28 = arith.constant 0 : index
      %56 = vector.load %arg4[%c0_25, %c1_26, %c0_27, %c0_28] : memref<1x3x9x128xf32, #tpu.memory_space<vmem>>, vector<1x1x9x128xf32>
      %57 = vector.shape_cast %56 : vector<1x1x9x128xf32> to vector<9x128xf32>
      %58 = vector.shape_cast %55 : vector<9x128xf32> to vector<1x1x9x128xf32>
      tpu.vector_store %arg4[%c0_25, %c1_26, %c0_27, %c0_28], %58 {strides = array<i32>} : memref<1x3x9x128xf32, #tpu.memory_space<vmem>>, vector<1x1x9x128xf32>,
      %c0_29 = arith.constant 0 : index
      %c2 = arith.constant 2 : index
      %c0_30 = arith.constant 0 : index
      %c0_31 = arith.constant 0 : index
      %59 = vector.load %arg4[%c0_29, %c2, %c0_30, %c0_31] : memref<1x3x9x128xf32, #tpu.memory_space<vmem>>, vector<1x1x9x128xf32>
      %60 = vector.shape_cast %59 : vector<1x1x9x128xf32> to vector<9x128xf32>
      %61 = arith.addf %60, %46 : vector<9x128xf32>
      %c0_32 = arith.constant 0 : index
      %c2_33 = arith.constant 2 : index
      %c0_34 = arith.constant 0 : index
      %c0_35 = arith.constant 0 : index
      %62 = vector.load %arg4[%c0_32, %c2_33, %c0_34, %c0_35] : memref<1x3x9x128xf32, #tpu.memory_space<vmem>>, vector<1x1x9x128xf32>
      %63 = vector.shape_cast %62 : vector<1x1x9x128xf32> to vector<9x128xf32>
      %64 = vector.shape_cast %61 : vector<9x128xf32> to vector<1x1x9x128xf32>
      tpu.vector_store %arg4[%c0_32, %c2_33, %c0_34, %c0_35], %64 {strides = array<i32>} : memref<1x3x9x128xf32, #tpu.memory_space<vmem>>, vector<1x1x9x128xf32>,
    } else {
    }
    %c64_i32_3 = arith.constant 64 : i32
    %12 = arith.cmpi slt, %2, %c64_i32_3 : i32
    %c128_i32_4 = arith.constant 128 : i32
    %13 = arith.addi %2, %c128_i32_4 : i32
    %c64_i32_5 = arith.constant 64 : i32
    %14 = arith.cmpi sgt, %13, %c64_i32_5 : i32
    %15 = arith.andi %12, %14 : i1
    %16 = arith.extui %15 : i1 to i32
    %c0_i32_6 = arith.constant 0 : i32
    %17 = arith.cmpi ne, %16, %c0_i32_6 : i32
    scf.if %17 {
      %cst = arith.constant 0.000000e+00 : f32
      %18 = vector.broadcast %cst : f32 to vector<9x128xf32>
      %c0_i32_7 = arith.constant 0 : i32
      %c128_i32_8 = arith.constant 128 : i32
      %19 = arith.muli %c0_i32_7, %c128_i32_8 : i32
      %20 = tpu.assume_multiple %19, 128 : i32
      %c0 = arith.constant 0 : index
      %21 = arith.index_cast %20 : i32 to index
      %22 = vector.load %arg2[%c0, %21] : memref<9x128xf32, #tpu.memory_space<vmem>>, vector<9x128xf32>
      %c0_9 = arith.constant 0 : index
      %23 = arith.index_cast %20 : i32 to index
      %24 = vector.load %arg3[%c0_9, %23] : memref<1x128xi32, #tpu.memory_space<vmem>>, vector<1x128xi32>
      %cst_10 = arith.constant dense<0xFF800000> : vector<128xf32>
      %25 = vector.multi_reduction <maximumf>, %22, %cst_10 [0] : vector<9x128xf32> to vector<128xf32>
      %26 = vector.shape_cast %25 : vector<128xf32> to vector<1x128xf32>
      %27 = vector.broadcast %26 : vector<1x128xf32> to vector<9x128xf32>
      %28 = arith.subf %22, %27 : vector<9x128xf32>
      %29 = math.exp %28 : vector<9x128xf32>
      %cst_11 = arith.constant dense<0.000000e+00> : vector<128xf32>
      %30 = vector.multi_reduction <add>, %29, %cst_11 [0] : vector<9x128xf32> to vector<128xf32>
      %31 = vector.shape_cast %30 : vector<128xf32> to vector<1x128xf32>
      %32 = tpu.reciprocal %31 {approx = true} : vector<1x128xf32> -> vector<1x128xf32>
      %33 = arith.mulf %31, %32 : vector<1x128xf32>
      %cst_12 = arith.constant 2.000000e+00 : f32
      %34 = vector.broadcast %cst_12 : f32 to vector<1x128xf32>
      %35 = arith.subf %34, %33 : vector<1x128xf32>
      %36 = arith.mulf %32, %35 : vector<1x128xf32>
      %37 = vector.broadcast %36 : vector<1x128xf32> to vector<9x128xf32>
      %38 = arith.mulf %29, %37 : vector<9x128xf32>
      %39 = vector.broadcast %24 : vector<1x128xi32> to vector<9x128xi32>
      %40 = arith.cmpi eq, %6, %39 : vector<9x128xi32>
      %41 = arith.extui %40 : vector<9x128xi1> to vector<9x128xi32>
      %42 = arith.sitofp %41 : vector<9x128xi32> to vector<9x128xf32>
      %43 = arith.addi %2, %20 : i32
      %44 = vector.broadcast %43 : i32 to vector<1x128xi32>
      %45 = arith.addi %7, %44 : vector<1x128xi32>
      %c64_i32_13 = arith.constant 64 : i32
      %46 = vector.broadcast %c64_i32_13 : i32 to vector<1x128xi32>
      %47 = arith.cmpi slt, %45, %46 : vector<1x128xi32>
      %cst_14 = arith.constant 0.000000e+00 : f32
      %48 = vector.shape_cast %47 : vector<1x128xi1> to vector<1x128xi1>
      %49 = vector.broadcast %48 : vector<1x128xi1> to vector<9x128xi1>
      %50 = vector.broadcast %cst_14 : f32 to vector<9x128xf32>
      %51 = arith.select %49, %38, %50 : vector<9x128xi1>, vector<9x128xf32>
      %cst_15 = arith.constant 0.000000e+00 : f32
      %52 = vector.shape_cast %47 : vector<1x128xi1> to vector<1x128xi1>
      %53 = vector.broadcast %52 : vector<1x128xi1> to vector<9x128xi1>
      %54 = vector.broadcast %cst_15 : f32 to vector<9x128xf32>
      %55 = arith.select %53, %42, %54 : vector<9x128xi1>, vector<9x128xf32>
      %56 = arith.mulf %55, %51 : vector<9x128xf32>
      %57 = arith.addf %18, %56 : vector<9x128xf32>
      %58 = arith.addf %18, %51 : vector<9x128xf32>
      %59 = arith.addf %18, %55 : vector<9x128xf32>
      %c1_i32_16 = arith.constant 1 : i32
      %c0_17 = arith.constant 0 : index
      %c0_18 = arith.constant 0 : index
      %c0_19 = arith.constant 0 : index
      %c0_20 = arith.constant 0 : index
      %60 = vector.load %arg4[%c0_17, %c0_18, %c0_19, %c0_20] : memref<1x3x9x128xf32, #tpu.memory_space<vmem>>, vector<1x1x9x128xf32>
      %61 = vector.shape_cast %60 : vector<1x1x9x128xf32> to vector<9x128xf32>
      %62 = arith.addf %61, %57 : vector<9x128xf32>
      %c0_21 = arith.constant 0 : index
      %c0_22 = arith.constant 0 : index
      %c0_23 = arith.constant 0 : index
      %c0_24 = arith.constant 0 : index
      %63 = vector.load %arg4[%c0_21, %c0_22, %c0_23, %c0_24] : memref<1x3x9x128xf32, #tpu.memory_space<vmem>>, vector<1x1x9x128xf32>
      %64 = vector.shape_cast %63 : vector<1x1x9x128xf32> to vector<9x128xf32>
      %65 = vector.shape_cast %62 : vector<9x128xf32> to vector<1x1x9x128xf32>
      tpu.vector_store %arg4[%c0_21, %c0_22, %c0_23, %c0_24], %65 {strides = array<i32>} : memref<1x3x9x128xf32, #tpu.memory_space<vmem>>, vector<1x1x9x128xf32>,
      %c0_25 = arith.constant 0 : index
      %c1 = arith.constant 1 : index
      %c0_26 = arith.constant 0 : index
      %c0_27 = arith.constant 0 : index
      %66 = vector.load %arg4[%c0_25, %c1, %c0_26, %c0_27] : memref<1x3x9x128xf32, #tpu.memory_space<vmem>>, vector<1x1x9x128xf32>
      %67 = vector.shape_cast %66 : vector<1x1x9x128xf32> to vector<9x128xf32>
      %68 = arith.addf %67, %58 : vector<9x128xf32>
      %c0_28 = arith.constant 0 : index
      %c1_29 = arith.constant 1 : index
      %c0_30 = arith.constant 0 : index
      %c0_31 = arith.constant 0 : index
      %69 = vector.load %arg4[%c0_28, %c1_29, %c0_30, %c0_31] : memref<1x3x9x128xf32, #tpu.memory_space<vmem>>, vector<1x1x9x128xf32>
      %70 = vector.shape_cast %69 : vector<1x1x9x128xf32> to vector<9x128xf32>
      %71 = vector.shape_cast %68 : vector<9x128xf32> to vector<1x1x9x128xf32>
      tpu.vector_store %arg4[%c0_28, %c1_29, %c0_30, %c0_31], %71 {strides = array<i32>} : memref<1x3x9x128xf32, #tpu.memory_space<vmem>>, vector<1x1x9x128xf32>,
      %c0_32 = arith.constant 0 : index
      %c2 = arith.constant 2 : index
      %c0_33 = arith.constant 0 : index
      %c0_34 = arith.constant 0 : index
      %72 = vector.load %arg4[%c0_32, %c2, %c0_33, %c0_34] : memref<1x3x9x128xf32, #tpu.memory_space<vmem>>, vector<1x1x9x128xf32>
      %73 = vector.shape_cast %72 : vector<1x1x9x128xf32> to vector<9x128xf32>
      %74 = arith.addf %73, %59 : vector<9x128xf32>
      %c0_35 = arith.constant 0 : index
      %c2_36 = arith.constant 2 : index
      %c0_37 = arith.constant 0 : index
      %c0_38 = arith.constant 0 : index
      %75 = vector.load %arg4[%c0_35, %c2_36, %c0_37, %c0_38] : memref<1x3x9x128xf32, #tpu.memory_space<vmem>>, vector<1x1x9x128xf32>
      %76 = vector.shape_cast %75 : vector<1x1x9x128xf32> to vector<9x128xf32>
      %77 = vector.shape_cast %74 : vector<9x128xf32> to vector<1x1x9x128xf32>
      tpu.vector_store %arg4[%c0_35, %c2_36, %c0_37, %c0_38], %77 {strides = array<i32>} : memref<1x3x9x128xf32, #tpu.memory_space<vmem>>, vector<1x1x9x128xf32>,
    } else {
    }
    return
  }
  func.func @transform_0(%arg0: i32, %arg1: i32) -> (i32, i32) {
    %c1_i32 = arith.constant 1 : i32
    %0 = arith.muli %arg0, %c1_i32 : i32
    %1 = arith.addi %0, %arg1 : i32
    %c0_i32 = arith.constant 0 : i32
    %2 = arith.minsi %1, %c0_i32 : i32
    %c0_i32_0 = arith.constant 0 : i32
    %c0_i32_1 = arith.constant 0 : i32
    return %c0_i32_0, %2 : i32, i32
  }
  func.func @transform_1(%arg0: i32, %arg1: i32) -> (i32, i32) {
    %c1_i32 = arith.constant 1 : i32
    %0 = arith.muli %arg0, %c1_i32 : i32
    %1 = arith.addi %0, %arg1 : i32
    %c0_i32 = arith.constant 0 : i32
    %2 = arith.minsi %1, %c0_i32 : i32
    %c0_i32_0 = arith.constant 0 : i32
    %c0_i32_1 = arith.constant 0 : i32
    return %c0_i32_0, %2 : i32, i32
  }
  func.func @transform_2(%arg0: i32, %arg1: i32) -> (i32, i32, i32, i32) {
    %c0_i32 = arith.constant 0 : i32
    %c0_i32_0 = arith.constant 0 : i32
    %c0_i32_1 = arith.constant 0 : i32
    %c0_i32_2 = arith.constant 0 : i32
    return %arg0, %c0_i32, %c0_i32_0, %c0_i32_1 : i32, i32, i32, i32
  }
}

</mosaic_0001>

<llo_original>
// kernel: f1_loss.1
$region0: #{f1_loss.1}
  #allocation0 [shape = 'u32[]', space=smem, size = 0x4, offset = 0x4, fixed_abs, tag = 'smem constant byte address 0x4 - core index']
  #allocation1 [shape = 'u32[144,128]{1,0:T(1,128)}', space=vmem, size = 0x12000, scoped, tag = 'internal scratch']
  %s0 = inlined_call_operand.hbm [shape: f32[9,64], index: 0, kind: input, shape index: {}]
  %s1 = inlined_call_operand.vmem [shape: s32[1,64], index: 1, kind: input, shape index: {}]
  %s2 = inlined_call_operand.vmem [shape: f32[1,3,9,128], index: 2, kind: output, shape index: {}]
  %s3 = sld [smem:[#allocation0]]
  $region34: #{f1_loss.1} parent=0
    _
  %s5 = ssub.s32 1, %s3
  %s6 = scalar_select 0, %s5, %s3
  $region1: #{f1_loss.1} parent=0
    #allocation2 [shape = 'u8[8192]{0}', space=vmem, size = 0x2000, scoped, tag = 'input window, operand 0, single buffered']
    #allocation3 [shape = 's32[1]{0}', space=sflag, size = 0x4, scoped, tag = 'scoped memory for f1_loss.1']
    %7 = vsyncpa [#allocation3], 0
    // Predicated region
    $region2: #{f1_loss.1} parent=1 // pred_check
      _
    $region3: #{f1_loss.1} parent=1 // pred_check_branch
      %9 = sbr.rel (0) target = $region5
    $region4: #{f1_loss.1} parent=1 // pred_region
      %s10 = sadd.s32 0, 0
      %p11 = scmp.lt.s32.totalorder %s10, 0
      %s12 = scalar_select %p11, %s10, 0
      %s14 = ssub.s32 256, 256
      %15 = vsyncadd [#allocation3], %s14
      %s16 = smul.addr %s12, 128
      %s17 = scalar_lea.hbm %s0, %s16
      %s18 = sshll.u32 [#allocation2], 4
      %s19 = int_to_ptr.vmem [resolvable:$true] %s18
      %24 = dma.hbm_to_vmem [thread:$0]  %s17, 256, %s19, [#allocation3], 128, 128, 8
    $region5: #{f1_loss.1} parent=1 // pred_fallthru
      _
    // Predicated region
    $region6: #{f1_loss.1} parent=1 // pred_check
      _
    $region7: #{f1_loss.1} parent=1 // pred_check_branch
      %26 = sbr.rel (0) target = $region9
    $region8: #{f1_loss.1} parent=1 // pred_region
      %s27 = sadd.s32 0, 0
      %p28 = scmp.lt.s32.totalorder %s27, 0
      %s29 = scalar_select %p28, %s27, 0
      %p30 = scmp.lt.s32.totalorder %s29, 0
      %s31 = scalar_select %p30, %s29, 0
      %s32 = scalar_lea.vmem %s1, %s31
      %s33 = sadd.s32 0, 0
      %p34 = scmp.lt.s32.totalorder %s33, 0
      %s35 = scalar_select %p34, %s33, 0
    $region9: #{f1_loss.1} parent=1 // pred_fallthru
      _
    // Predicated region
    $region10: #{f1_loss.1} parent=1 // pred_check
      _
    $region11: #{f1_loss.1} parent=1 // pred_check_branch
      %37 = sbr.rel (0) target = $region13
    $region12: #{f1_loss.1} parent=1 // pred_region
      %38 = dma.done [#allocation3], 256
    $region13: #{f1_loss.1} parent=1 // pred_fallthru
      _
    %s39 = sadd.s32 0, 0
    %p40 = scmp.lt.s32.totalorder %s39, 0
    %s41 = scalar_select %p40, %s39, 0
    %p42 = scmp.lt.s32.totalorder %s41, 0
    %s43 = scalar_select %p42, %s41, 0
    %s44 = scalar_lea.vmem %s1, %s43
    %s45 = sadd.s32 0, 0
    %p46 = scmp.lt.s32.totalorder %s45, 0
    %s47 = scalar_select %p46, %s45, 0
    %s48 = sadd.s32 0, 0
    %p49 = scmp.lt.s32.totalorder %s48, 0
    %s50 = scalar_select %p49, %s48, 0
    %p51 = scmp.lt.s32.totalorder %s50, 0
    %s52 = scalar_select %p51, %s50, 0
    %s53 = scalar_lea.vmem %s1, %s52
    %s54 = sadd.s32 0, 0
    %p55 = scmp.lt.s32.totalorder %s54, 0
    %s56 = scalar_select %p55, %s54, 0
    %s57 = sadd.s32 0, 0
    %s58 = smul.u32 %s57, 128
    %p59 = scmp.eq.s32.totalorder 0, 0
    // Predicated region
    $region14: #{f1_loss.1} parent=1 // pred_check
      %p60 = pneg %p59
    $region15: #{f1_loss.1} parent=1 // pred_check_branch
      %62 = sbr.rel (%p60) target = $region17
    $region16: #{f1_loss.1} parent=1 // pred_region
      %63 = vst [vmem:[%s2] sm:$0xff] 0.0
      %64 = vst [vmem:[%s2 + $0x8] sm:$0x1] 0.0
      %65 = vst [vmem:[%s2 + $0x10] sm:$0xff] 0.0
      %66 = vst [vmem:[%s2 + $0x18] sm:$0x1] 0.0
      %67 = vst [vmem:[%s2 + $0x20] sm:$0xff] 0.0
      %68 = vst [vmem:[%s2 + $0x28] sm:$0x1] 0.0
    $region17: #{f1_loss.1} parent=1 // pred_fallthru
      _
    %v69 = vlaneseq
    %v70 = vshrl.u32 %v69, 7
    %v71 = vadd.s32 %v70, 8
    %v72 = vlaneseq
    %v73 = vand.u32 %v72, 127
    %s74 = sadd.s32 %s58, 128
    %p75 = scmp.le.s32.totalorder %s74, 64
    // Predicated region
    $region18: #{f1_loss.1} parent=1 // pred_check
      %p76 = pneg %p75
    $region19: #{f1_loss.1} parent=1 // pred_check_branch
      %78 = sbr.rel (%p76) target = $region21
    $region20: #{f1_loss.1} parent=1 // pred_region
      %v79 = vld [vmem:[#allocation2] sm:$0xff]
      %v80 = vld [vmem:[#allocation2 + $0x8] sm:$0x1]
      %v81 = vld [vmem:[%s53] sm:$0x1]
      %vm82 = vcmask 1040384
      %v83 = vsel %vm82, %v80, -inf
      %v84 = vmax.f32 %v79, %v83
      %v85 = vrot.slane %v84, 4
      %v86 = vmax.f32 %v84, %v85
      %v87 = vrot.slane %v86, 2
      %v88 = vmax.f32 %v86, %v87
      %v89 = vrot.slane %v88, 1
      %v90 = vmax.f32 %v88, %v89
      %v91 = vsub.f32 %v79, %v90
      %v92 = vsub.f32 %v80, %v90
      %v93 = vmul.f32 %v91, 1.442695
      %v94 = vpow.pop %v93
      %v95 = vmul.f32 %v92, 1.442695
      %v96 = vpow.pop %v95
      %v97 = vsel %vm82, %v96, 0.0
      %v98 = vadd.f32 %v94, %v97
      %v99 = vrot.slane %v98, 4
      %v100 = vadd.f32 %v98, %v99
      %v101 = vrot.slane %v100, 2
      %v102 = vadd.f32 %v100, %v101
      %v103 = vrot.slane %v102, 1
      %v104 = vadd.f32 %v102, %v103
      %v105 = vrcp.pop %v104
      %v106 = vmul.f32 %v104, %v105
      %v107 = vsub.f32 2.0, %v106
      %v108 = vmul.f32 %v105, %v107
      %v109 = vmul.f32 %v94, %v108
      %v110 = vmul.f32 %v96, %v108
      %v111 = vlaneseq
      %v112 = vshrl.u32 %v111, 7
      %v113 = vsub.s32 0, %v112
      %v114 = vrot.slane %v81, %v113
      %vm115 = vcmp.eq.s32.totalorder %v70, %v114
      %vm116 = vcmp.eq.s32.totalorder %v71, %v114
      %v117 = vsel %vm115, 1, 0
      %v118 = vsel %vm116, 1, 0
      %v119 = vcvt.s32.f32 %v117
      %v120 = vcvt.s32.f32 %v118
      %v121 = vmul.f32 %v119, %v109
      %v122 = vmul.f32 %v120, %v110
      %v123 = vadd.f32 %v121, 0.0
      %v124 = vadd.f32 %v122, 0.0
      %v125 = vadd.f32 %v109, 0.0
      %v126 = vadd.f32 %v110, 0.0
      %v127 = vadd.f32 %v119, 0.0
      %v128 = vadd.f32 %v120, 0.0
      %v129 = vld [vmem:[%s2] sm:$0xff]
      %v130 = vld [vmem:[%s2 + $0x8] sm:$0x1]
      %v131 = vadd.f32 %v129, %v123
      %v132 = vadd.f32 %v130, %v124
      %133 = vst [vmem:[%s2] sm:$0xff] %v131
      %134 = vst [vmem:[%s2 + $0x8] sm:$0x1] %v132
      %s135 = scalar_lea.vmem %s2, 16
      %v136 = vld [vmem:[%s135] sm:$0xff]
      %v137 = vld [vmem:[%s135 + $0x8] sm:$0x1]
      %v138 = vadd.f32 %v136, %v125
      %v139 = vadd.f32 %v137, %v126
      %140 = vst [vmem:[%s135] sm:$0xff] %v138
      %141 = vst [vmem:[%s135 + $0x8] sm:$0x1] %v139
      %s142 = scalar_lea.vmem %s2, 32
      %v143 = vld [vmem:[%s142] sm:$0xff]
      %v144 = vld [vmem:[%s142 + $0x8] sm:$0x1]
      %v145 = vadd.f32 %v143, %v127
      %v146 = vadd.f32 %v144, %v128
      %147 = vst [vmem:[%s142] sm:$0xff] %v145
      %148 = vst [vmem:[%s142 + $0x8] sm:$0x1] %v146
    $region21: #{f1_loss.1} parent=1 // pred_fallthru
      _
    %p149 = scmp.lt.s32.totalorder %s58, 64
    %p150 = scmp.gt.s32.totalorder %s74, 64
    %p151 = pnand %p149, %p150
    %p152 = pneg %p151
    // Predicated region
    $region22: #{f1_loss.1} parent=1 // pred_check
      _
    $region23: #{f1_loss.1} parent=1 // pred_check_branch
      %154 = sbr.rel (%p151) target = $region25
    $region24: #{f1_loss.1} parent=1 // pred_region
      %v155 = vld [vmem:[#allocation2] sm:$0xff]
      %v156 = vld [vmem:[#allocation2 + $0x8] sm:$0x1]
      %v157 = vld [vmem:[%s53] sm:$0x1]
      %vm158 = vcmask 1040384
      %v159 = vsel %vm158, %v156, -inf
      %v160 = vmax.f32 %v155, %v159
      %v161 = vrot.slane %v160, 4
      %v162 = vmax.f32 %v160, %v161
      %v163 = vrot.slane %v162, 2
      %v164 = vmax.f32 %v162, %v163
      %v165 = vrot.slane %v164, 1
      %v166 = vmax.f32 %v164, %v165
      %v167 = vsub.f32 %v155, %v166
      %v168 = vsub.f32 %v156, %v166
      %v169 = vmul.f32 %v167, 1.442695
      %v170 = vpow.pop %v169
      %v171 = vmul.f32 %v168, 1.442695
      %v172 = vpow.pop %v171
      %v173 = vsel %vm158, %v172, 0.0
      %v174 = vadd.f32 %v170, %v173
      %v175 = vrot.slane %v174, 4
      %v176 = vadd.f32 %v174, %v175
      %v177 = vrot.slane %v176, 2
      %v178 = vadd.f32 %v176, %v177
      %v179 = vrot.slane %v178, 1
      %v180 = vadd.f32 %v178, %v179
      %v181 = vrcp.pop %v180
      %v182 = vmul.f32 %v180, %v181
      %v183 = vsub.f32 2.0, %v182
      %v184 = vmul.f32 %v181, %v183
      %v185 = vmul.f32 %v170, %v184
      %v186 = vmul.f32 %v172, %v184
      %v187 = vlaneseq
      %v188 = vshrl.u32 %v187, 7
      %v189 = vsub.s32 0, %v188
      %v190 = vrot.slane %v157, %v189
      %vm191 = vcmp.eq.s32.totalorder %v70, %v190
      %vm192 = vcmp.eq.s32.totalorder %v71, %v190
      %v193 = vsel %vm191, 1, 0
      %v194 = vsel %vm192, 1, 0
      %v195 = vcvt.s32.f32 %v193
      %v196 = vcvt.s32.f32 %v194
      %s197 = sadd.s32 %s58, 0
      %v198 = vstv %s197
      %v199 = vadd.s32 %v73, %v198
      %vm200 = vcmp.lt.s32.totalorder %v199, 64
      %v201 = vsel %vm200, 1, 0
      %vm202 = vcmp.eq.s32.totalorder %v201, 1
      %v203 = vsel %vm202, %v185, 0.0
      %v204 = vsel %vm202, %v186, 0.0
      %v205 = vsel %vm202, %v195, 0.0
      %v206 = vsel %vm202, %v196, 0.0
      %v207 = vmul.f32 %v205, %v203
      %v208 = vmul.f32 %v206, %v204
      %v209 = vadd.f32 %v207, 0.0
      %v210 = vadd.f32 %v208, 0.0
      %v211 = vadd.f32 %v203, 0.0
      %v212 = vadd.f32 %v204, 0.0
      %v213 = vadd.f32 %v205, 0.0
      %v214 = vadd.f32 %v206, 0.0
      %v215 = vld [vmem:[%s2] sm:$0xff]
      %v216 = vld [vmem:[%s2 + $0x8] sm:$0x1]
      %v217 = vadd.f32 %v215, %v209
      %v218 = vadd.f32 %v216, %v210
      %219 = vst [vmem:[%s2] sm:$0xff] %v217
      %220 = vst [vmem:[%s2 + $0x8] sm:$0x1] %v218
      %s221 = scalar_lea.vmem %s2, 16
      %v222 = vld [vmem:[%s221] sm:$0xff]
      %v223 = vld [vmem:[%s221 + $0x8] sm:$0x1]
      %v224 = vadd.f32 %v222, %v211
      %v225 = vadd.f32 %v223, %v212
      %226 = vst [vmem:[%s221] sm:$0xff] %v224
      %227 = vst [vmem:[%s221 + $0x8] sm:$0x1] %v225
      %s228 = scalar_lea.vmem %s2, 32
      %v229 = vld [vmem:[%s228] sm:$0xff]
      %v230 = vld [vmem:[%s228 + $0x8] sm:$0x1]
      %v231 = vadd.f32 %v229, %v213
      %v232 = vadd.f32 %v230, %v214
      %233 = vst [vmem:[%s228] sm:$0xff] %v231
      %234 = vst [vmem:[%s228 + $0x8] sm:$0x1] %v232
    $region25: #{f1_loss.1} parent=1 // pred_fallthru
      _
    // Predicated region
    $region26: #{f1_loss.1} parent=1 // pred_check
      _
    $region27: #{f1_loss.1} parent=1 // pred_check_branch
      %236 = sbr.rel (0) target = $region29
    $region28: #{f1_loss.1} parent=1 // pred_region
      _
    $region29: #{f1_loss.1} parent=1 // pred_fallthru
      _
    // Predicated region
    $region30: #{f1_loss.1} parent=1 // pred_check
      _
    $region31: #{f1_loss.1} parent=1 // pred_check_branch
      %238 = sbr.rel (0) target = $region33
    $region32: #{f1_loss.1} parent=1 // pred_region
      _
    $region33: #{f1_loss.1} parent=1 // pred_fallthru
      _
    %239 = vsyncpa [#allocation3], 1

</llo_original>
